<compile_context>
chip_gen: v7x
topology: tpu7x:2x2x1
jax: 0.10.0
libtpu: 0.0.40
codegen_flags: <defaults>
</compile_context>

<pallas_src>
import functools

import jax
import jax.numpy as jnp
from jax.experimental import pallas as pl
from jax.experimental.pallas import tpu as pltpu


# ----------------------------------------------------------------------------
# Fused kernel: LayerNorm (gamma/beta pre-folded) + Linear(F->H) + GELU +
# masked time-sum accumulation, with the final mean + Linear(H->E) projection
# on the last time tile.
#
# Grid: (batch_tiles [parallel], time_tiles [arbitrary/reduction]).
# ----------------------------------------------------------------------------
def _fused_forward_kernel(x_ref, w_fp_ref, b_fp_ref, w_pr_ref, b_pr_ref,
                          o_ref, acc_ref, *, total_t, total_f, time_block):
    ti = pl.program_id(1)
    last_ti = pl.num_programs(1) - 1

    @pl.when(ti == 0)
    def _():
        acc_ref[...] = jnp.zeros_like(acc_ref)

    x = x_ref[...].astype(jnp.float32)                      # (bb, tb, Fp)
    bb, tb, fp = x.shape
    x2 = x.reshape(bb * tb, fp)                             # merge leading dims

    # One-pass LayerNorm statistics over the REAL feature width (padded
    # feature columns are zero and contribute nothing to the sums).
    inv_f = 1.0 / total_f
    mu = jnp.sum(x2, axis=-1, keepdims=True) * inv_f
    ex2 = jnp.sum(x2 * x2, axis=-1, keepdims=True) * inv_f
    var = ex2 - mu * mu
    xn = (x2 - mu) * jax.lax.rsqrt(var + 1e-5)
    # gamma/beta are folded into w_fp / b_fp on the host.  Padded F rows of
    # w_fp are zero, so the garbage values of xn in padded lanes are inert.

    # Linear(F -> H) on the MXU: bf16 operands, f32 accumulation.
    h2 = jnp.dot(xn.astype(jnp.bfloat16), w_fp_ref[...],
                 preferred_element_type=jnp.float32) + b_fp_ref[...]
    # TODO(synk): PyTorch nn.GELU defaults to the exact erf form; the tanh
    #             approximation is used here (the in-file reference matches).
    h2 = jax.nn.gelu(h2, approximate=True)                  # f32 elementwise
    hcur = h2.reshape(bb, tb, -1)                           # (bb, tb, H)

    if total_t % time_block != 0:
        # Only the last time tile contains zero-padded rows: gate the mask
        # there and keep interior tiles mask-free.
        @pl.when(ti != last_ti)
        def _():
            acc_ref[...] += jnp.sum(hcur, axis=1)

        @pl.when(ti == last_ti)
        def _():
            t_idx = ti * time_block + jax.lax.broadcasted_iota(
                jnp.int32, (1, tb, 1), 1)
            masked = jnp.where(t_idx < total_t, hcur, 0.0)
            acc_ref[...] += jnp.sum(masked, axis=1)
    else:
        acc_ref[...] += jnp.sum(hcur, axis=1)

    @pl.when(ti == last_ti)
    def _():
        pooled = acc_ref[...] * (1.0 / total_t)             # mean over real T
        emb = jnp.dot(pooled.astype(jnp.bfloat16), w_pr_ref[...],
                      preferred_element_type=jnp.float32) + b_pr_ref[...]
        o_ref[...] = emb.astype(o_ref.dtype)


def _vmem_limit_bytes(batch_block, time_block, f_pad, h, e):
    """Rough per-step VMEM budget (double-buffered blocks + live f32 tiles)."""
    in_blk = batch_block * time_block * f_pad * 2                 # bf16 input
    weights = f_pad * h * 2 + h * e * 2 + h * 4 + e * 4           # bf16 W, f32 b
    out_blk = batch_block * e * 4
    scratch = batch_block * h * 4
    live = batch_block * time_block * (f_pad + h) * 4             # x/xn + h2 f32
    est = 2 * (in_blk + weights + out_blk) + scratch + live
    # 2x headroom, floor 16 MiB, cap 48 MiB so the same setting fits v7x's
    # 64 MiB physical VMEM.
    return int(min(max(2 * est, 16 * 1024 * 1024), 48 * 1024 * 1024))


# ----------------------------------------------------------------------------
# Full forward: waveforms -> embeddings (one pallas_call).
# ----------------------------------------------------------------------------
def wav2vec2bert_for_triplet_forward(waveforms, params, *, frame_size,
                                     batch_block=8, time_block=128):
    """waveforms: (B, L) -> embeddings (B, E).

    batch_block must be a multiple of 8; time_block a multiple of 8.  For real
    wav2vec2-bert sizes (T ~ thousands, H = 1024) raise time_block toward
    256-512 (better HBM-roofline DMAs, amortized per-step overhead) while
    keeping batch_block*time_block*(F_pad+H)*4 + double-buffered inputs inside
    the VMEM budget; on v7x also keep B/batch_block >= 2 so both TensorCores
    get work on the parallel batch axis.
    """
    b, l = waveforms.shape
    f = frame_size
    t = l // f
    h = params["w_fp"].shape[1]
    e = params["w_proj"].shape[1]

    # Lane-dense feature width for the MXU K dimension and DMA segments.
    f_pad = max(128, 128 * pl.cdiv(f, 128))

    # Fold LayerNorm gamma/beta into the F->H projection (host-side, free):
    #   (xn * gamma + beta) @ W + b == xn @ (diag(gamma) @ W) + (beta @ W + b)
    w_fp = params["ln_gamma"].reshape(f, 1).astype(jnp.float32) * \
        params["w_fp"].astype(jnp.float32)
    b_fp = (params["b_fp"].reshape(1, h).astype(jnp.float32)
            + params["ln_beta"].reshape(1, f).astype(jnp.float32)
            @ params["w_fp"].astype(jnp.float32))
    w_fp = jnp.pad(w_fp, ((0, f_pad - f), (0, 0))).astype(jnp.bfloat16)
    w_proj = params["w_proj"].astype(jnp.bfloat16)
    b_proj = params["b_proj"].reshape(1, e).astype(jnp.float32)

    # Feature "extraction": deterministic non-overlapping framing into (B,T,F)
    # (stand-in for the pretrained mel filterbank; same tensor interface).
    features = waveforms[:, : t * f].reshape(b, t, f)

    # Pad batch / time / feature up to block multiples.  Padded time rows are
    # masked inside the kernel (last tile only); padded feature columns are
    # inert (zero weight rows); padded batch rows are dropped from the output.
    b_tiles = pl.cdiv(b, batch_block)
    t_tiles = pl.cdiv(t, time_block)
    b_pad = b_tiles * batch_block
    t_pad = t_tiles * time_block
    if (b_pad, t_pad, f_pad) != (b, t, f):
        features = jnp.pad(features,
                           ((0, b_pad - b), (0, t_pad - t), (0, f_pad - f)))
    features = features.astype(jnp.bfloat16)   # halve input HBM traffic

    kernel = functools.partial(_fused_forward_kernel,
                               total_t=t, total_f=f, time_block=time_block)

    emb = pl.pallas_call(
        kernel,
        out_shape=jax.ShapeDtypeStruct((b_pad, e), jnp.float32),
        grid_spec=pltpu.PrefetchScalarGridSpec(
            num_scalar_prefetch=0,
            grid=(b_tiles, t_tiles),                  # reduction (time) axis last
            in_specs=[
                pl.BlockSpec((batch_block, time_block, f_pad),
                             lambda bi, ti: (bi, ti, 0)),
                pl.BlockSpec((f_pad, h), lambda bi, ti: (0, 0)),  # w_fp (folded)
                pl.BlockSpec((1, h), lambda bi, ti: (0, 0)),      # b_fp (folded)
                pl.BlockSpec((h, e), lambda bi, ti: (0, 0)),      # w_proj
                pl.BlockSpec((1, e), lambda bi, ti: (0, 0)),      # b_proj
            ],
            out_specs=pl.BlockSpec((batch_block, e), lambda bi, ti: (bi, 0)),
            scratch_shapes=[pltpu.VMEM((batch_block, h), jnp.float32)],
        ),
        compiler_params=pltpu.CompilerParams(
            dimension_semantics=("parallel", "arbitrary"),
            vmem_limit_bytes=_vmem_limit_bytes(batch_block, time_block,
                                               f_pad, h, e)),
    )(features, w_fp, b_fp, w_proj, b_proj)

    return emb[:b]


# ----------------------------------------------------------------------------
# Pure-JAX reference (full f32, un-folded params) for a correctness check.
# ----------------------------------------------------------------------------
def reference_forward(waveforms, params, *, frame_size):
    b, l = waveforms.shape
    f = frame_size
    t = l // f
    # Match the kernel's bf16 input storage (part of input prep, not the math).
    x = waveforms[:, : t * f].reshape(b, t, f)
    x = x.astype(jnp.bfloat16).astype(jnp.float32)
    mu = jnp.mean(x, axis=-1, keepdims=True)
    var = jnp.mean((x - mu) ** 2, axis=-1, keepdims=True)
    xn = (x - mu) * jax.lax.rsqrt(var + 1e-5)
    xn = xn * params["ln_gamma"] + params["ln_beta"]
    hidden = jax.nn.gelu(
        jnp.einsum("btf,fh->bth", xn, params["w_fp"]) + params["b_fp"],
        approximate=True)
    pooled = hidden.mean(axis=1)
    return pooled @ params["w_proj"] + params["b_proj"]


if __name__ == "__main__":
    # Small shapes consistent with the module's forward:
    #   waveforms [B, L] -> frames [B, T, F] -> hidden [B, T, H] -> emb [B, E]
    # H and E are multiples of 128 (lane-dense outputs); F = 80 exercises the
    # lane-padding path; T = 20 is deliberately NOT a multiple of the time
    # block to exercise the last-tile remainder masking.
    B, T, F, H, E = 16, 20, 80, 256, 256
    L = T * F

    key = jax.random.PRNGKey(0)
    k_wav, k_g, k_wfp, k_bfp, k_wpr, k_bpr = jax.random.split(key, 6)

    waveforms = jax.random.normal(k_wav, (B, L), dtype=jnp.float32)

    params = {
        # Non-trivial gamma and nonzero beta so the gamma/beta folding and the
        # time-padding mask are actually exercised by the self-check.
        "ln_gamma": 1.0 + 0.1 * jax.random.normal(k_g, (F,), jnp.float32),
        "ln_beta": jnp.full((F,), 0.5, jnp.float32),
        "w_fp": jax.random.normal(k_wfp, (F, H), jnp.float32) * (1.0 / F ** 0.5),
        "b_fp": jax.random.normal(k_bfp, (H,), jnp.float32) * 0.02,
        "w_proj": jax.random.normal(k_wpr, (H, E), jnp.float32) * (1.0 / H ** 0.5),
        "b_proj": jax.random.normal(k_bpr, (E,), jnp.float32) * 0.02,
    }

    # time_block=8 at this tiny T so the grid has several reduction steps
    # (exercises the accumulator + last-tile-mask pattern); use 128-512 at
    # realistic T.  batch_block=8 -> 2 batch tiles (both v7x cores busy).
    emb = wav2vec2bert_for_triplet_forward(
        waveforms, params, frame_size=F, batch_block=8, time_block=8)
    emb = jax.block_until_ready(emb)

    ref = reference_forward(waveforms, params, frame_size=F)
    assert emb.shape == (B, E)
    # bf16 MXU operands vs. the f32 reference -> loose-but-meaningful tolerance.
    assert jnp.allclose(emb, ref, atol=2e-2, rtol=2e-2), "mismatch vs reference"

    print("KERNEL_OK")
</pallas_src>

<mosaic_0001>
module attributes {stable_mosaic.version = 11 : i64} {
  func.func @_fused_forward_kernel(%arg0: i32, %arg1: i32, %arg2: memref<8x8x128xbf16, #tpu.memory_space<vmem>>, %arg3: memref<128x256xbf16, #tpu.memory_space<vmem>>, %arg4: memref<1x256xf32, #tpu.memory_space<vmem>>, %arg5: memref<256x256xbf16, #tpu.memory_space<vmem>>, %arg6: memref<1x256xf32, #tpu.memory_space<vmem>>, %arg7: memref<8x256xf32, #tpu.memory_space<vmem>>, %arg8: memref<8x256xf32, #tpu.memory_space<vmem>>) attributes {dimension_semantics = [#tpu.dimension_semantics<parallel>, #tpu.dimension_semantics<arbitrary>], iteration_bounds = array<i64: 2, 3>, scalar_prefetch = 0 : i64, scratch_operands = 1 : i64, tpu.core_type = #tpu.core_type<tc>, window_params = [{transform_indices = @transform_0, window_bounds = array<i64: 8, 8, 128>}, {pipeline_mode = #tpu.pipeline_mode<synchronous>, transform_indices = @transform_1, window_bounds = array<i64: 128, 256>}, {pipeline_mode = #tpu.pipeline_mode<synchronous>, transform_indices = @transform_2, window_bounds = array<i64: 1, 256>}, {pipeline_mode = #tpu.pipeline_mode<synchronous>, transform_indices = @transform_3, window_bounds = array<i64: 256, 256>}, {pipeline_mode = #tpu.pipeline_mode<synchronous>, transform_indices = @transform_4, window_bounds = array<i64: 1, 256>}, {transform_indices = @transform_5, window_bounds = array<i64: 8, 256>}]} {
    %c0_i32 = arith.constant 0 : i32
    %0 = arith.cmpi eq, %arg1, %c0_i32 : i32
    %1 = arith.extui %0 : i1 to i32
    %c0_i32_0 = arith.constant 0 : i32
    %2 = arith.cmpi ne, %1, %c0_i32_0 : i32
    scf.if %2 {
      %cst_21 = arith.constant 0.000000e+00 : f32
      %53 = vector.broadcast %cst_21 : f32 to vector<8x256xf32>
      %c0_22 = arith.constant 0 : index
      %c0_23 = arith.constant 0 : index
      %54 = vector.load %arg8[%c0_22, %c0_23] : memref<8x256xf32, #tpu.memory_space<vmem>>, vector<8x256xf32>
      tpu.vector_store %arg8[%c0_22, %c0_23], %53 {strides = array<i32>} : memref<8x256xf32, #tpu.memory_space<vmem>>, vector<8x256xf32>,
    } else {
    }
    %c0 = arith.constant 0 : index
    %c0_1 = arith.constant 0 : index
    %c0_2 = arith.constant 0 : index
    %3 = vector.load %arg2[%c0, %c0_1, %c0_2] : memref<8x8x128xbf16, #tpu.memory_space<vmem>>, vector<8x8x128xbf16>
    %4 = arith.extf %3 : vector<8x8x128xbf16> to vector<8x8x128xf32>
    %5 = vector.shape_cast %4 : vector<8x8x128xf32> to vector<64x128xf32>
    %cst = arith.constant dense<0.000000e+00> : vector<64xf32>
    %6 = vector.multi_reduction <add>, %5, %cst [1] : vector<64x128xf32> to vector<64xf32>
    %7 = vector.shape_cast %6 : vector<64xf32> to vector<64x1xf32>
    %cst_3 = arith.constant 1.250000e-02 : f32
    %8 = vector.broadcast %cst_3 : f32 to vector<64x1xf32>
    %9 = arith.mulf %7, %8 : vector<64x1xf32>
    %10 = arith.mulf %5, %5 : vector<64x128xf32>
    %cst_4 = arith.constant dense<0.000000e+00> : vector<64xf32>
    %11 = vector.multi_reduction <add>, %10, %cst_4 [1] : vector<64x128xf32> to vector<64xf32>
    %12 = vector.shape_cast %11 : vector<64xf32> to vector<64x1xf32>
    %cst_5 = arith.constant 1.250000e-02 : f32
    %13 = vector.broadcast %cst_5 : f32 to vector<64x1xf32>
    %14 = arith.mulf %12, %13 : vector<64x1xf32>
    %15 = arith.mulf %9, %9 : vector<64x1xf32>
    %16 = arith.subf %14, %15 : vector<64x1xf32>
    %17 = vector.broadcast %9 : vector<64x1xf32> to vector<64x128xf32>
    %18 = arith.subf %5, %17 : vector<64x128xf32>
    %cst_6 = arith.constant 9.99999974E-6 : f32
    %19 = vector.broadcast %cst_6 : f32 to vector<64x1xf32>
    %20 = arith.addf %16, %19 : vector<64x1xf32>
    %21 = math.rsqrt %20 : vector<64x1xf32>
    %22 = vector.broadcast %21 : vector<64x1xf32> to vector<64x128xf32>
    %23 = arith.mulf %18, %22 : vector<64x128xf32>
    %24 = arith.truncf %23 : vector<64x128xf32> to vector<64x128xbf16>
    %c0_7 = arith.constant 0 : index
    %c0_8 = arith.constant 0 : index
    %25 = vector.load %arg3[%c0_7, %c0_8] : memref<128x256xbf16, #tpu.memory_space<vmem>>, vector<128x256xbf16>
    %cst_9 = arith.constant dense<0.000000e+00> : vector<64x256xf32>
    %26 = tpu.matmul %24, %25, %cst_9 {dimension_numbers = #tpu.dot_dimension_numbers<[1], [0], [0], [1], [0, 0, 1, 1], [], []>} : vector<64x128xbf16>, vector<128x256xbf16>, vector<64x256xf32> -> vector<64x256xf32>
    %c0_10 = arith.constant 0 : index
    %c0_11 = arith.constant 0 : index
    %27 = vector.load %arg4[%c0_10, %c0_11] : memref<1x256xf32, #tpu.memory_space<vmem>>, vector<1x256xf32>
    %28 = vector.broadcast %27 : vector<1x256xf32> to vector<64x256xf32>
    %29 = arith.addf %26, %28 : vector<64x256xf32>
    %30 = arith.mulf %29, %29 : vector<64x256xf32>
    %31 = arith.mulf %29, %30 : vector<64x256xf32>
    %cst_12 = arith.constant 4.471500e-02 : f32
    %32 = vector.broadcast %cst_12 : f32 to vector<64x256xf32>
    %33 = arith.mulf %32, %31 : vector<64x256xf32>
    %34 = arith.addf %29, %33 : vector<64x256xf32>
    %cst_13 = arith.constant 0.797884583 : f32
    %35 = vector.broadcast %cst_13 : f32 to vector<64x256xf32>
    %36 = arith.mulf %35, %34 : vector<64x256xf32>
    %37 = math.tanh %36 : vector<64x256xf32>
    %cst_14 = arith.constant 1.000000e+00 : f32
    %38 = vector.broadcast %cst_14 : f32 to vector<64x256xf32>
    %39 = arith.addf %38, %37 : vector<64x256xf32>
    %cst_15 = arith.constant 5.000000e-01 : f32
    %40 = vector.broadcast %cst_15 : f32 to vector<64x256xf32>
    %41 = arith.mulf %40, %39 : vector<64x256xf32>
    %42 = arith.mulf %29, %41 : vector<64x256xf32>
    %43 = vector.shape_cast %42 : vector<64x256xf32> to vector<8x8x256xf32>
    %c2_i32 = arith.constant 2 : i32
    %44 = arith.cmpi ne, %arg1, %c2_i32 : i32
    %45 = arith.extui %44 : i1 to i32
    %c0_i32_16 = arith.constant 0 : i32
    %46 = arith.cmpi ne, %45, %c0_i32_16 : i32
    scf.if %46 {
      %c0_21 = arith.constant 0 : index
      %c0_22 = arith.constant 0 : index
      %53 = vector.load %arg8[%c0_21, %c0_22] : memref<8x256xf32, #tpu.memory_space<vmem>>, vector<8x256xf32>
      %cst_23 = arith.constant dense<0.000000e+00> : vector<8x256xf32>
      %54 = vector.multi_reduction <add>, %43, %cst_23 [1] : vector<8x8x256xf32> to vector<8x256xf32>
      %55 = arith.addf %53, %54 : vector<8x256xf32>
      %c0_24 = arith.constant 0 : index
      %c0_25 = arith.constant 0 : index
      %56 = vector.load %arg8[%c0_24, %c0_25] : memref<8x256xf32, #tpu.memory_space<vmem>>, vector<8x256xf32>
      tpu.vector_store %arg8[%c0_24, %c0_25], %55 {strides = array<i32>} : memref<8x256xf32, #tpu.memory_space<vmem>>, vector<8x256xf32>,
    } else {
    }
    %c2_i32_17 = arith.constant 2 : i32
    %47 = arith.cmpi eq, %arg1, %c2_i32_17 : i32
    %48 = arith.extui %47 : i1 to i32
    %c0_i32_18 = arith.constant 0 : i32
    %49 = arith.cmpi ne, %48, %c0_i32_18 : i32
    scf.if %49 {
      %c8_i32 = arith.constant 8 : i32
      %53 = arith.muli %arg1, %c8_i32 : i32
      %54 = tpu.iota {dimensions = array<i32: 1>} : vector<1x8x1xi32>
      %55 = vector.broadcast %53 : i32 to vector<1x8x1xi32>
      %56 = arith.addi %55, %54 : vector<1x8x1xi32>
      %c20_i32 = arith.constant 20 : i32
      %57 = vector.broadcast %c20_i32 : i32 to vector<1x8x1xi32>
      %58 = arith.cmpi slt, %56, %57 : vector<1x8x1xi32>
      %cst_21 = arith.constant 0.000000e+00 : f32
      %59 = vector.shape_cast %58 : vector<1x8x1xi1> to vector<1x8x1xi1>
      %60 = vector.broadcast %59 : vector<1x8x1xi1> to vector<8x8x256xi1>
      %61 = vector.broadcast %cst_21 : f32 to vector<8x8x256xf32>
      %62 = arith.select %60, %43, %61 : vector<8x8x256xi1>, vector<8x8x256xf32>
      %c0_22 = arith.constant 0 : index
      %c0_23 = arith.constant 0 : index
      %63 = vector.load %arg8[%c0_22, %c0_23] : memref<8x256xf32, #tpu.memory_space<vmem>>, vector<8x256xf32>
      %cst_24 = arith.constant dense<0.000000e+00> : vector<8x256xf32>
      %64 = vector.multi_reduction <add>, %62, %cst_24 [1] : vector<8x8x256xf32> to vector<8x256xf32>
      %65 = arith.addf %63, %64 : vector<8x256xf32>
      %c0_25 = arith.constant 0 : index
      %c0_26 = arith.constant 0 : index
      %66 = vector.load %arg8[%c0_25, %c0_26] : memref<8x256xf32, #tpu.memory_space<vmem>>, vector<8x256xf32>
      tpu.vector_store %arg8[%c0_25, %c0_26], %65 {strides = array<i32>} : memref<8x256xf32, #tpu.memory_space<vmem>>, vector<8x256xf32>,
    } else {
    }
    %c2_i32_19 = arith.constant 2 : i32
    %50 = arith.cmpi eq, %arg1, %c2_i32_19 : i32
    %51 = arith.extui %50 : i1 to i32
    %c0_i32_20 = arith.constant 0 : i32
    %52 = arith.cmpi ne, %51, %c0_i32_20 : i32
    scf.if %52 {
      %c0_21 = arith.constant 0 : index
      %c0_22 = arith.constant 0 : index
      %53 = vector.load %arg8[%c0_21, %c0_22] : memref<8x256xf32, #tpu.memory_space<vmem>>, vector<8x256xf32>
      %cst_23 = arith.constant 5.000000e-02 : f32
      %54 = vector.broadcast %cst_23 : f32 to vector<8x256xf32>
      %55 = arith.mulf %53, %54 : vector<8x256xf32>
      %56 = arith.truncf %55 : vector<8x256xf32> to vector<8x256xbf16>
      %c0_24 = arith.constant 0 : index
      %c0_25 = arith.constant 0 : index
      %57 = vector.load %arg5[%c0_24, %c0_25] : memref<256x256xbf16, #tpu.memory_space<vmem>>, vector<256x256xbf16>
      %cst_26 = arith.constant dense<0.000000e+00> : vector<8x256xf32>
      %58 = tpu.matmul %56, %57, %cst_26 {dimension_numbers = #tpu.dot_dimension_numbers<[1], [0], [0], [1], [0, 0, 1, 1], [], []>} : vector<8x256xbf16>, vector<256x256xbf16>, vector<8x256xf32> -> vector<8x256xf32>
      %c0_27 = arith.constant 0 : index
      %c0_28 = arith.constant 0 : index
      %59 = vector.load %arg6[%c0_27, %c0_28] : memref<1x256xf32, #tpu.memory_space<vmem>>, vector<1x256xf32>
      %60 = vector.broadcast %59 : vector<1x256xf32> to vector<8x256xf32>
      %61 = arith.addf %58, %60 : vector<8x256xf32>
      %c0_29 = arith.constant 0 : index
      %c0_30 = arith.constant 0 : index
      %62 = vector.load %arg7[%c0_29, %c0_30] : memref<8x256xf32, #tpu.memory_space<vmem>>, vector<8x256xf32>
      tpu.vector_store %arg7[%c0_29, %c0_30], %61 {strides = array<i32>} : memref<8x256xf32, #tpu.memory_space<vmem>>, vector<8x256xf32>,
    } else {
    }
    return
  }
  func.func @transform_0(%arg0: i32, %arg1: i32) -> (i32, i32, i32) {
    %c0_i32 = arith.constant 0 : i32
    %c0_i32_0 = arith.constant 0 : i32
    return %arg0, %arg1, %c0_i32 : i32, i32, i32
  }
  func.func @transform_1(%arg0: i32, %arg1: i32) -> (i32, i32) {
    %c0_i32 = arith.constant 0 : i32
    %c0_i32_0 = arith.constant 0 : i32
    %c0_i32_1 = arith.constant 0 : i32
    return %c0_i32, %c0_i32_0 : i32, i32
  }
  func.func @transform_2(%arg0: i32, %arg1: i32) -> (i32, i32) {
    %c0_i32 = arith.constant 0 : i32
    %c0_i32_0 = arith.constant 0 : i32
    %c0_i32_1 = arith.constant 0 : i32
    return %c0_i32, %c0_i32_0 : i32, i32
  }
  func.func @transform_3(%arg0: i32, %arg1: i32) -> (i32, i32) {
    %c0_i32 = arith.constant 0 : i32
    %c0_i32_0 = arith.constant 0 : i32
    %c0_i32_1 = arith.constant 0 : i32
    return %c0_i32, %c0_i32_0 : i32, i32
  }
  func.func @transform_4(%arg0: i32, %arg1: i32) -> (i32, i32) {
    %c0_i32 = arith.constant 0 : i32
    %c0_i32_0 = arith.constant 0 : i32
    %c0_i32_1 = arith.constant 0 : i32
    return %c0_i32, %c0_i32_0 : i32, i32
  }
  func.func @transform_5(%arg0: i32, %arg1: i32) -> (i32, i32) {
    %c0_i32 = arith.constant 0 : i32
    %c0_i32_0 = arith.constant 0 : i32
    return %arg0, %c0_i32 : i32, i32
  }
}

</mosaic_0001>

<llo_original>
// kernel: tpu_custom_call.1
$region0: #{tpu_custom_call.1}
  #allocation0 [shape = 'u32[]', space=smem, size = 0x4, offset = 0x4, fixed_abs, tag = 'smem constant byte address 0x4 - core index']
  #allocation1 [shape = 'u32[144,128]{1,0:T(1,128)}', space=vmem, size = 0x12000, scoped, tag = 'internal scratch']
  #allocation2 [shape = 'f32[8,256]{1,0:T(8,128)}', space=vmem, size = 0x2000, scoped, tag = 'scratch operand']
  %s0 = inlined_call_operand.hbm [shape: bf16[16,24,128], index: 0, kind: input, shape index: {}]
  %s1 = inlined_call_operand.hbm [shape: bf16[128,256], index: 1, kind: input, shape index: {}]
  %s2 = inlined_call_operand.vmem [shape: f32[1,256], index: 2, kind: input, shape index: {}]
  %s3 = inlined_call_operand.hbm [shape: bf16[256,256], index: 3, kind: input, shape index: {}]
  %s4 = inlined_call_operand.vmem [shape: f32[1,256], index: 4, kind: input, shape index: {}]
  %s5 = inlined_call_operand.hbm [shape: f32[16,256], index: 5, kind: output, shape index: {}]
  %s6 = sld [smem:[#allocation0]]
  $region77: #{tpu_custom_call.1} parent=0
    _
  %s8 = ssub.s32 1, %s6
  %s9 = scalar_select 0, %s8, %s6
  $region1: #{tpu_custom_call.1} parent=0
    #allocation3 [shape = 'u8[32768]{0}', space=vmem, size = 0x8000, scoped, tag = 'input window, operand 0']
    #allocation4 [shape = 's32[2]{0}', space=sflag, size = 0x8, scoped, tag = 'scoped memory for tpu_custom_call.1']
    #allocation5 [shape = 's32[2]{0}', space=sflag, size = 0x8, scoped, tag = 'scoped memory for tpu_custom_call.1']
    #allocation6 [shape = 'u8[65536]{0}', space=vmem, size = 0x10000, scoped, tag = 'input window, operand 1, single buffered']
    #allocation7 [shape = 's32[1]{0}', space=sflag, size = 0x4, scoped, tag = 'scoped memory for tpu_custom_call.1']
    #allocation8 [shape = 'u8[131072]{0}', space=vmem, size = 0x20000, scoped, tag = 'input window, operand 3, single buffered']
    #allocation9 [shape = 'u8[16384]{0}', space=vmem, size = 0x4000, scoped, tag = 'output window, operand 0']
    %10 = vsyncpa [#allocation4], 0
    %s11 = scalar_lea.sflag [#allocation4], 1
    %12 = vsyncpa %s11, 0
    %13 = vsyncpa [#allocation7], 0
    %14 = vsyncpa [#allocation5], 0
    %s15 = scalar_lea.sflag [#allocation5], 1
    %16 = vsyncpa %s15, 0
    loop: start=0, step=1, limit=8
    $region2: #{tpu_custom_call.1} parent=1 // loop_pre_header
      _
    $region3: #{tpu_custom_call.1} parent=1 // loop_header
      %s18 = sphi 0, %s22
      %p19 = scmp.ge.s32.totalorder %s18, 8
      %s25 = sphi 0, %s37
      %s26 = sphi 0, %s33
      %s27 = sphi 0, %s25
      %s28 = sphi 0, %s26
      %s29 = sphi 0, %s27
      %s30 = sphi 0, %s28
      %s42 = sphi 0, %s44
      %s45 = sphi 0, %s42
      %s46 = sphi 0, %s45
      %s62 = sphi 0, %s46
      %s66 = sphi 0, %s66
      %s68 = sphi 0, %s66
      %s69 = sphi 0, %s68
      %s83 = sphi 0, %s69
      %s87 = sphi 0, %s87
      %s89 = sphi 0, %s87
      %s90 = sphi 0, %s89
      %s104 = sphi 0, %s90
      %s108 = sphi 0, %s108
      %s110 = sphi 0, %s108
      %s111 = sphi 0, %s110
      %s125 = sphi 0, %s111
      %s129 = sphi 0, %s129
      %s131 = sphi 0, %s129
      %s132 = sphi 0, %s131
      %s146 = sphi 0, %s132
      %s152 = sphi 0, %s154
      %s155 = sphi 0, %s152
      %s156 = sphi 0, %s155
      %s172 = sphi 0, %s156
    $region4: #{tpu_custom_call.1} parent=1 // loop_header_branch
      %21 = sbr.rel (%p19) target = $region8
    $region5: #{tpu_custom_call.1} parent=1 // loop_body
      %s23 = ssub.s32 %s18, 1
      %s24 = ssub.s32 %s18, 2
      %s31 = sadd.s32 1, %s26
      %p32 = scmp.ge.s32.totalorder %s31, 3
      %s33 = scalar_select %p32, 0, %s31
      %s34 = sadd.s32 1, %s25
      %s35 = scalar_select %p32, %s34, %s25
      %p36 = scmp.ge.s32.totalorder %s35, 2
      %s37 = scalar_select %p36, 0, %s35
      %s38 = ssub.s32 %s25, %s37
      %s39 = ssub.s32 %s26, %s33
      %s40 = sor.u32 %s38, %s39
      %p41 = scmp.eq.s32.totalorder %s40, 0
      %s43 = sadd.s32 %s42, 1
      %s44 = scalar_select %p41, %s42, %s43
      %p47 = pneg %p41
      %p48 = scmp.eq.s32.totalorder %s18, 5
      %p49 = por %p47, %p48
      %p50 = scmp.ne.s32.totalorder %s42, %s45
      %p51 = scmp.eq.s32.totalorder %s18, 0
      %p52 = por %p50, %p51
      %p53 = scmp.ne.s32.totalorder %s42, %s45
      %p54 = scmp.eq.s32.totalorder %s23, 5
      %p55 = por %p53, %p54
      %p56 = scmp.ne.s32.totalorder %s45, %s46
      %p57 = scmp.eq.s32.totalorder %s23, 0
      %p58 = por %p56, %p57
      %p59 = scmp.ne.s32.totalorder %s45, %s46
      %p60 = scmp.eq.s32.totalorder %s24, 5
      %p61 = por %p59, %p60
      %p63 = scmp.ne.s32.totalorder %s46, %s62
      %p64 = scmp.eq.s32.totalorder %s24, 0
      %p65 = por %p63, %p64
      %s67 = sadd.s32 %s66, 1
      %p70 = scmp.eq.s32.totalorder %s18, 5
      %p71 = scmp.ne.s32.totalorder %s66, %s68
      %p72 = scmp.eq.s32.totalorder %s18, 0
      %p73 = por %p71, %p72
      %p74 = scmp.ne.s32.totalorder %s66, %s68
      %p75 = scmp.eq.s32.totalorder %s23, 5
      %p76 = por %p74, %p75
      %p77 = scmp.ne.s32.totalorder %s68, %s69
      %p78 = scmp.eq.s32.totalorder %s23, 0
      %p79 = por %p77, %p78
      %p80 = scmp.ne.s32.totalorder %s68, %s69
      %p81 = scmp.eq.s32.totalorder %s24, 5
      %p82 = por %p80, %p81
      %p84 = scmp.ne.s32.totalorder %s69, %s83
      %p85 = scmp.eq.s32.totalorder %s24, 0
      %p86 = por %p84, %p85
      %s88 = sadd.s32 %s87, 1
      %p91 = scmp.eq.s32.totalorder %s18, 5
      %p92 = scmp.ne.s32.totalorder %s87, %s89
      %p93 = scmp.eq.s32.totalorder %s18, 0
      %p94 = por %p92, %p93
      %p95 = scmp.ne.s32.totalorder %s87, %s89
      %p96 = scmp.eq.s32.totalorder %s23, 5
      %p97 = por %p95, %p96
      %p98 = scmp.ne.s32.totalorder %s89, %s90
      %p99 = scmp.eq.s32.totalorder %s23, 0
      %p100 = por %p98, %p99
      %p101 = scmp.ne.s32.totalorder %s89, %s90
      %p102 = scmp.eq.s32.totalorder %s24, 5
      %p103 = por %p101, %p102
      %p105 = scmp.ne.s32.totalorder %s90, %s104
      %p106 = scmp.eq.s32.totalorder %s24, 0
      %p107 = por %p105, %p106
      %s109 = sadd.s32 %s108, 1
      %p112 = scmp.eq.s32.totalorder %s18, 5
      %p113 = scmp.ne.s32.totalorder %s108, %s110
      %p114 = scmp.eq.s32.totalorder %s18, 0
      %p115 = por %p113, %p114
      %p116 = scmp.ne.s32.totalorder %s108, %s110
      %p117 = scmp.eq.s32.totalorder %s23, 5
      %p118 = por %p116, %p117
      %p119 = scmp.ne.s32.totalorder %s110, %s111
      %p120 = scmp.eq.s32.totalorder %s23, 0
      %p121 = por %p119, %p120
      %p122 = scmp.ne.s32.totalorder %s110, %s111
      %p123 = scmp.eq.s32.totalorder %s24, 5
      %p124 = por %p122, %p123
      %p126 = scmp.ne.s32.totalorder %s111, %s125
      %p127 = scmp.eq.s32.totalorder %s24, 0
      %p128 = por %p126, %p127
      %s130 = sadd.s32 %s129, 1
      %p133 = scmp.eq.s32.totalorder %s18, 5
      %p134 = scmp.ne.s32.totalorder %s129, %s131
      %p135 = scmp.eq.s32.totalorder %s18, 0
      %p136 = por %p134, %p135
      %p137 = scmp.ne.s32.totalorder %s129, %s131
      %p138 = scmp.eq.s32.totalorder %s23, 5
      %p139 = por %p137, %p138
      %p140 = scmp.ne.s32.totalorder %s131, %s132
      %p141 = scmp.eq.s32.totalorder %s23, 0
      %p142 = por %p140, %p141
      %p143 = scmp.ne.s32.totalorder %s131, %s132
      %p144 = scmp.eq.s32.totalorder %s24, 5
      %p145 = por %p143, %p144
      %p147 = scmp.ne.s32.totalorder %s132, %s146
      %p148 = scmp.eq.s32.totalorder %s24, 0
      %p149 = por %p147, %p148
      %s150 = ssub.s32 %s25, %s37
      %p151 = scmp.eq.s32.totalorder %s150, 0
      %s153 = sadd.s32 %s152, 1
      %s154 = scalar_select %p151, %s152, %s153
      %p157 = pneg %p151
      %p158 = scmp.eq.s32.totalorder %s18, 5
      %p159 = por %p157, %p158
      %p160 = scmp.ne.s32.totalorder %s152, %s155
      %p161 = scmp.eq.s32.totalorder %s18, 0
      %p162 = por %p160, %p161
      %p163 = scmp.ne.s32.totalorder %s152, %s155
      %p164 = scmp.eq.s32.totalorder %s23, 5
      %p165 = por %p163, %p164
      %p166 = scmp.ne.s32.totalorder %s155, %s156
      %p167 = scmp.eq.s32.totalorder %s23, 0
      %p168 = por %p166, %p167
      %p169 = scmp.ne.s32.totalorder %s155, %s156
      %p170 = scmp.eq.s32.totalorder %s24, 5
      %p171 = por %p169, %p170
      %p173 = scmp.ne.s32.totalorder %s156, %s172
      %p174 = scmp.eq.s32.totalorder %s24, 0
      %p175 = por %p173, %p174
      %p176 = scmp.le.s32.totalorder 1, %s18
      %p177 = scmp.lt.s32.totalorder %s18, 7
      %p178 = pnand %p176, %p177
      %p179 = pneg %p178
      // Predicated region
      $region9: #{tpu_custom_call.1} parent=5 // pred_check
        _
      $region10: #{tpu_custom_call.1} parent=5 // pred_check_branch
        %181 = sbr.rel (%p178) target = $region12
      $region11: #{tpu_custom_call.1} parent=5 // pred_region
        %s182 = ssub.s32 %s18, 1
        // Predicated region
        $region13: #{tpu_custom_call.1} parent=11 // pred_check
          %p183 = pneg %p79
        $region14: #{tpu_custom_call.1} parent=11 // pred_check_branch
          %185 = sbr.rel (%p183) target = $region16
        $region15: #{tpu_custom_call.1} parent=11 // pred_region
          %s187 = ssub.s32 2048, 2048
          %188 = vsyncadd [#allocation7], %s187
          %s189 = sshll.u32 [#allocation6], 4
          %s190 = int_to_ptr.vmem [resolvable:$true] %s189
          %195 = dma.hbm_to_vmem [thread:$0]  %s1, 2048, %s190, [#allocation7], 128, 128, 8
        $region16: #{tpu_custom_call.1} parent=11 // pred_fallthru
          _
        // Predicated region
        $region17: #{tpu_custom_call.1} parent=11 // pred_check
          %p196 = pneg %p100
        $region18: #{tpu_custom_call.1} parent=11 // pred_check_branch
          %198 = sbr.rel (%p196) target = $region20
        $region19: #{tpu_custom_call.1} parent=11 // pred_region
          _
        $region20: #{tpu_custom_call.1} parent=11 // pred_fallthru
          _
        // Predicated region
        $region21: #{tpu_custom_call.1} parent=11 // pred_check
          %p199 = pneg %p121
        $region22: #{tpu_custom_call.1} parent=11 // pred_check_branch
          %201 = sbr.rel (%p199) target = $region24
        $region23: #{tpu_custom_call.1} parent=11 // pred_region
          %s203 = ssub.s32 4096, 4096
          %204 = vsyncadd [#allocation7], %s203
          %s205 = sshll.u32 [#allocation8], 4
          %s206 = int_to_ptr.vmem [resolvable:$true] %s205
          %211 = dma.hbm_to_vmem [thread:$0]  %s3, 4096, %s206, [#allocation7], 128, 128, 8
        $region24: #{tpu_custom_call.1} parent=11 // pred_fallthru
          _
        // Predicated region
        $region25: #{tpu_custom_call.1} parent=11 // pred_check
          %p212 = pneg %p142
        $region26: #{tpu_custom_call.1} parent=11 // pred_check_branch
          %214 = sbr.rel (%p212) target = $region28
        $region27: #{tpu_custom_call.1} parent=11 // pred_region
          _
        $region28: #{tpu_custom_call.1} parent=11 // pred_fallthru
          _
      $region12: #{tpu_custom_call.1} parent=5 // pred_fallthru
        _
      %p215 = scmp.lt.s32.totalorder %s18, 6
      // Predicated region
      $region29: #{tpu_custom_call.1} parent=5 // pred_check
        %p216 = pneg %p215
      $region30: #{tpu_custom_call.1} parent=5 // pred_check_branch
        %218 = sbr.rel (%p216) target = $region32
      $region31: #{tpu_custom_call.1} parent=5 // pred_region
        // Predicated region
        $region33: #{tpu_custom_call.1} parent=31 // pred_check
          %p219 = pneg %p52
        $region34: #{tpu_custom_call.1} parent=31 // pred_check_branch
          %221 = sbr.rel (%p219) target = $region36
        $region35: #{tpu_custom_call.1} parent=31 // pred_region
          %s222 = sand.u32 %s42, 1
          %s223 = scalar_lea.sflag [#allocation4], %s222
          %s224 = sand.u32 %s42, 1
          %s225 = smul.addr %s224, 32
          %s226 = scalar_lea.vmem [#allocation3], %s225
          %s227 = smul.u32 8, %s25
          %s229 = ssub.s32 512, 512
          %230 = vsyncadd %s223, %s229
          %s231 = smul.addr %s227, 3
          %s232 = sadd.s32 %s26, %s231
          %s233 = smul.addr %s232, 64
          %s234 = scalar_lea.hbm %s0, %s233
          %s235 = sshll.u32 %s226, 4
          %s236 = int_to_ptr.vmem [resolvable:$true] %s235
          %241 = dma.hbm_to_vmem [thread:$0]  %s234, 512, %s236, %s223, 192, 64, 4
        $region36: #{tpu_custom_call.1} parent=31 // pred_fallthru
          _
      $region32: #{tpu_custom_call.1} parent=5 // pred_fallthru
        _
      %p242 = scmp.le.s32.totalorder 1, %s18
      %p243 = scmp.lt.s32.totalorder %s18, 7
      %p244 = pnand %p242, %p243
      %p245 = pneg %p244
      // Predicated region
      $region37: #{tpu_custom_call.1} parent=5 // pred_check
        _
      $region38: #{tpu_custom_call.1} parent=5 // pred_check_branch
        %247 = sbr.rel (%p244) target = $region40
      $region39: #{tpu_custom_call.1} parent=5 // pred_region
        %s248 = ssub.s32 %s18, 1
        %s249 = sand.u32 %s45, 1
        %s250 = scalar_lea.sflag [#allocation4], %s249
        %s251 = sand.u32 %s45, 1
        %s252 = smul.addr %s251, 32
        %s253 = scalar_lea.vmem [#allocation3], %s252
        // Predicated region
        $region41: #{tpu_custom_call.1} parent=39 // pred_check
          %p254 = pneg %p58
        $region42: #{tpu_custom_call.1} parent=39 // pred_check_branch
          %256 = sbr.rel (%p254) target = $region44
        $region43: #{tpu_custom_call.1} parent=39 // pred_region
          %257 = dma.done %s250, 512
        $region44: #{tpu_custom_call.1} parent=39 // pred_fallthru
          _
        // Predicated region
        $region45: #{tpu_custom_call.1} parent=39 // pred_check
          %p258 = pneg %p79
        $region46: #{tpu_custom_call.1} parent=39 // pred_check_branch
          %260 = sbr.rel (%p258) target = $region48
        $region47: #{tpu_custom_call.1} parent=39 // pred_region
          %261 = dma.done [#allocation7], 2048
        $region48: #{tpu_custom_call.1} parent=39 // pred_fallthru
          _
        // Predicated region
        $region49: #{tpu_custom_call.1} parent=39 // pred_check
          %p262 = pneg %p121
        $region50: #{tpu_custom_call.1} parent=39 // pred_check_branch
          %264 = sbr.rel (%p262) target = $region52
        $region51: #{tpu_custom_call.1} parent=39 // pred_region
          %265 = dma.done [#allocation7], 4096
        $region52: #{tpu_custom_call.1} parent=39 // pred_fallthru
          _
        %s266 = sand.u32 %s45, 1
        %s267 = scalar_lea.sflag [#allocation4], %s266
        %s268 = sand.u32 %s45, 1
        %s269 = smul.addr %s268, 32
        %s270 = scalar_lea.vmem [#allocation3], %s269
        %p271 = pneg %p58
        %p272 = pneg %p55
        %p273 = pneg %p79
        %p274 = pneg %p76
        %p275 = pneg %p100
        %p276 = pneg %p97
        %p277 = pneg %p121
        %p278 = pneg %p118
        %p279 = pneg %p142
        %p280 = pneg %p139
        %p281 = pneg %p168
        %p282 = pneg %p165
        %s283 = sand.u32 %s155, 1
        %s284 = scalar_lea.sflag [#allocation5], %s283
        %s285 = sand.u32 %s155, 1
        %s286 = smul.addr %s285, 16
        %s287 = scalar_lea.vmem [#allocation9], %s286
        %s288 = smul.u32 8, %s27
        %p290 = scmp.eq.s32.totalorder %s28, 0
        // Predicated region
        $region53: #{tpu_custom_call.1} parent=39 // pred_check
          %p291 = pneg %p290
        $region54: #{tpu_custom_call.1} parent=39 // pred_check_branch
          %293 = sbr.rel (%p291) target = $region56
        $region55: #{tpu_custom_call.1} parent=39 // pred_region
          %294 = vst [vmem:[#allocation2] sm:$0xff] 0.0
          %295 = vst [vmem:[#allocation2 + $0x8] sm:$0xff] 0.0
        $region56: #{tpu_custom_call.1} parent=39 // pred_fallthru
          _
        %v296 = vld [vmem:[%s253] sm:$0xf]
        %v297 = vld [vmem:[%s253 + $0x4] sm:$0xf]
        %v298 = vld [vmem:[%s253 + $0x8] sm:$0xf]
        %v299 = vld [vmem:[%s253 + $0xc] sm:$0xf]
        %v300 = vld [vmem:[%s253 + $0x10] sm:$0xf]
        %v301 = vld [vmem:[%s253 + $0x14] sm:$0xf]
        %v302 = vld [vmem:[%s253 + $0x18] sm:$0xf]
        %v303 = vld [vmem:[%s253 + $0x1c] sm:$0xf]
        %v304 = vunpack.c.l.bf16 %v296
        %v305 = vunpack.c.l.bf16 %v297
        %v306 = vunpack.c.l.bf16 %v298
        %v307 = vunpack.c.l.bf16 %v299
        %v308 = vunpack.c.l.bf16 %v300
        %v309 = vunpack.c.l.bf16 %v301
        %v310 = vunpack.c.l.bf16 %v302
        %v311 = vunpack.c.l.bf16 %v303
        %312 = vadd.xlane.f32.xlu0 %v304
        %v313 = vpop.xlane.xlu0 %312
        %314 = vadd.xlane.f32.xlu0 %v305
        %v315 = vpop.xlane.xlu0 %314
        %316 = vadd.xlane.f32.xlu0 %v306
        %v317 = vpop.xlane.xlu0 %316
        %318 = vadd.xlane.f32.xlu0 %v307
        %v319 = vpop.xlane.xlu0 %318
        %320 = vadd.xlane.f32.xlu0 %v308
        %v321 = vpop.xlane.xlu0 %320
        %322 = vadd.xlane.f32.xlu0 %v309
        %v323 = vpop.xlane.xlu0 %322
        %324 = vadd.xlane.f32.xlu0 %v310
        %v325 = vpop.xlane.xlu0 %324
        %326 = vadd.xlane.f32.xlu0 %v311
        %v327 = vpop.xlane.xlu0 %326
        %v328 = vmul.f32 %v313, 0.0125
        %v329 = vmul.f32 %v315, 0.0125
        %v330 = vmul.f32 %v317, 0.0125
        %v331 = vmul.f32 %v319, 0.0125
        %v332 = vmul.f32 %v321, 0.0125
        %v333 = vmul.f32 %v323, 0.0125
        %v334 = vmul.f32 %v325, 0.0125
        %v335 = vmul.f32 %v327, 0.0125
        %v336 = vmul.f32 %v304, %v304
        %v337 = vmul.f32 %v305, %v305
        %v338 = vmul.f32 %v306, %v306
        %v339 = vmul.f32 %v307, %v307
        %v340 = vmul.f32 %v308, %v308
        %v341 = vmul.f32 %v309, %v309
        %v342 = vmul.f32 %v310, %v310
        %v343 = vmul.f32 %v311, %v311
        %344 = vadd.xlane.f32.xlu0 %v336
        %v345 = vpop.xlane.xlu0 %344
        %346 = vadd.xlane.f32.xlu0 %v337
        %v347 = vpop.xlane.xlu0 %346
        %348 = vadd.xlane.f32.xlu0 %v338
        %v349 = vpop.xlane.xlu0 %348
        %350 = vadd.xlane.f32.xlu0 %v339
        %v351 = vpop.xlane.xlu0 %350
        %352 = vadd.xlane.f32.xlu0 %v340
        %v353 = vpop.xlane.xlu0 %352
        %354 = vadd.xlane.f32.xlu0 %v341
        %v355 = vpop.xlane.xlu0 %354
        %356 = vadd.xlane.f32.xlu0 %v342
        %v357 = vpop.xlane.xlu0 %356
        %358 = vadd.xlane.f32.xlu0 %v343
        %v359 = vpop.xlane.xlu0 %358
        %v360 = vmul.f32 %v345, 0.0125
        %v361 = vmul.f32 %v347, 0.0125
        %v362 = vmul.f32 %v349, 0.0125
        %v363 = vmul.f32 %v351, 0.0125
        %v364 = vmul.f32 %v353, 0.0125
        %v365 = vmul.f32 %v355, 0.0125
        %v366 = vmul.f32 %v357, 0.0125
        %v367 = vmul.f32 %v359, 0.0125
        %v368 = vmul.f32 %v328, %v328
        %v369 = vmul.f32 %v329, %v329
        %v370 = vmul.f32 %v330, %v330
        %v371 = vmul.f32 %v331, %v331
        %v372 = vmul.f32 %v332, %v332
        %v373 = vmul.f32 %v333, %v333
        %v374 = vmul.f32 %v334, %v334
        %v375 = vmul.f32 %v335, %v335
        %v376 = vsub.f32 %v360, %v368
        %v377 = vsub.f32 %v361, %v369
        %v378 = vsub.f32 %v362, %v370
        %v379 = vsub.f32 %v363, %v371
        %v380 = vsub.f32 %v364, %v372
        %v381 = vsub.f32 %v365, %v373
        %v382 = vsub.f32 %v366, %v374
        %v383 = vsub.f32 %v367, %v375
        %v384 = vsub.f32 %v304, %v328
        %v385 = vsub.f32 %v305, %v329
        %v386 = vsub.f32 %v306, %v330
        %v387 = vsub.f32 %v307, %v331
        %v388 = vsub.f32 %v308, %v332
        %v389 = vsub.f32 %v309, %v333
        %v390 = vsub.f32 %v310, %v334
        %v391 = vsub.f32 %v311, %v335
        %v392 = vadd.f32 %v376, 1e-05
        %v393 = vadd.f32 %v377, 1e-05
        %v394 = vadd.f32 %v378, 1e-05
        %v395 = vadd.f32 %v379, 1e-05
        %v396 = vadd.f32 %v380, 1e-05
        %v397 = vadd.f32 %v381, 1e-05
        %v398 = vadd.f32 %v382, 1e-05
        %v399 = vadd.f32 %v383, 1e-05
        %v400 = vrsqrt.pop %v392
        %v401 = vrsqrt.pop %v393
        %v402 = vrsqrt.pop %v394
        %v403 = vrsqrt.pop %v395
        %v404 = vrsqrt.pop %v396
        %v405 = vrsqrt.pop %v397
        %v406 = vrsqrt.pop %v398
        %v407 = vrsqrt.pop %v399
        %v408 = vmul.f32 %v384, %v400
        %v409 = vmul.f32 %v385, %v401
        %v410 = vmul.f32 %v386, %v402
        %v411 = vmul.f32 %v387, %v403
        %v412 = vmul.f32 %v388, %v404
        %v413 = vmul.f32 %v389, %v405
        %v414 = vmul.f32 %v390, %v406
        %v415 = vmul.f32 %v391, %v407
        %v416 = vpack.c.bf16 %v409, %v408
        %v417 = vpack.c.bf16 %v411, %v410
        %v418 = vpack.c.bf16 %v413, %v412
        %v419 = vpack.c.bf16 %v415, %v414
        %v420 = vld [vmem:[#allocation6] sm:$0xff]
        %v421 = vld [vmem:[#allocation6 + $0x8] sm:$0xff]
        %v422 = vld [vmem:[#allocation6 + $0x10] sm:$0xff]
        %v423 = vld [vmem:[#allocation6 + $0x18] sm:$0xff]
        %v424 = vld [vmem:[#allocation6 + $0x20] sm:$0xff]
        %v425 = vld [vmem:[#allocation6 + $0x28] sm:$0xff]
        %v426 = vld [vmem:[#allocation6 + $0x30] sm:$0xff]
        %v427 = vld [vmem:[#allocation6 + $0x38] sm:$0xff]
        %v428 = vld [vmem:[#allocation6 + $0x40] sm:$0xff]
        %v429 = vld [vmem:[#allocation6 + $0x48] sm:$0xff]
        %v430 = vld [vmem:[#allocation6 + $0x50] sm:$0xff]
        %v431 = vld [vmem:[#allocation6 + $0x58] sm:$0xff]
        %v432 = vld [vmem:[#allocation6 + $0x60] sm:$0xff]
        %v433 = vld [vmem:[#allocation6 + $0x68] sm:$0xff]
        %v434 = vld [vmem:[#allocation6 + $0x70] sm:$0xff]
        %v435 = vld [vmem:[#allocation6 + $0x78] sm:$0xff]
        %v436 = vld [vmem:[%s2] sm:$0x3]
        %v438 = vlaneseq
        %v439 = vshrl.u32 %v438, 7
        %v440 = vsub.s32 0, %v439
        %v441 = vrot.slane %v436, %v440
        %v442 = vlaneseq
        %v443 = vshrl.u32 %v442, 7
        %v444 = vsub.s32 1, %v443
        %v445 = vrot.slane %v436, %v444
        %v464 = vunpack.c.l.b16 %v420
        %v465 = vunpack.c.h.b16 %v420
        %v466 = vunpack.c.l.b16 %v421
        %v467 = vunpack.c.h.b16 %v421
        %v468 = vunpack.c.l.b16 %v422
        %v469 = vunpack.c.h.b16 %v422
        %v470 = vunpack.c.l.b16 %v423
        %v471 = vunpack.c.h.b16 %v423
        %v472 = vunpack.c.l.b16 %v424
        %v473 = vunpack.c.h.b16 %v424
        %v474 = vunpack.c.l.b16 %v425
        %v475 = vunpack.c.h.b16 %v425
        %v476 = vunpack.c.l.b16 %v426
        %v477 = vunpack.c.h.b16 %v426
        %v478 = vunpack.c.l.b16 %v427
        %v479 = vunpack.c.h.b16 %v427
        %v480 = vunpack.c.l.b16 %v428
        %v481 = vunpack.c.h.b16 %v428
        %v482 = vunpack.c.l.b16 %v429
        %v483 = vunpack.c.h.b16 %v429
        %v484 = vunpack.c.l.b16 %v430
        %v485 = vunpack.c.h.b16 %v430
        %v486 = vunpack.c.l.b16 %v431
        %v487 = vunpack.c.h.b16 %v431
        %v488 = vunpack.c.l.b16 %v432
        %v489 = vunpack.c.h.b16 %v432
        %v490 = vunpack.c.l.b16 %v433
        %v491 = vunpack.c.h.b16 %v433
        %v492 = vunpack.c.l.b16 %v434
        %v493 = vunpack.c.h.b16 %v434
        %v494 = vunpack.c.l.b16 %v435
        %v495 = vunpack.c.h.b16 %v435
        %v496 = vpack.c.b16 %v466, %v464
        %v497 = vpack.c.b16 %v467, %v465
        %v498 = vpack.c.b16 %v470, %v468
        %v499 = vpack.c.b16 %v471, %v469
        %v500 = vpack.c.b16 %v474, %v472
        %v501 = vpack.c.b16 %v475, %v473
        %v502 = vpack.c.b16 %v478, %v476
        %v503 = vpack.c.b16 %v479, %v477
        %v504 = vpack.c.b16 %v482, %v480
        %v505 = vpack.c.b16 %v483, %v481
        %v506 = vpack.c.b16 %v486, %v484
        %v507 = vpack.c.b16 %v487, %v485
        %v508 = vpack.c.b16 %v490, %v488
        %v509 = vpack.c.b16 %v491, %v489
        %v510 = vpack.c.b16 %v494, %v492
        %v511 = vpack.c.b16 %v495, %v493
        %528 = vmatprep.subr.bf16.mxu0 %v497
        %529 = vmatpush1.bf16.msra.mxu0 %v496
        %530 = vmatprep.subr.bf16.mxu0 %v499
        %531 = vmatpush1.bf16.msra.mxu0 %v498
        %532 = vmatprep.subr.bf16.mxu0 %v501
        %533 = vmatpush1.bf16.msra.mxu0 %v500
        %534 = vmatprep.subr.bf16.mxu0 %v503
        %535 = vmatpush1.bf16.msra.mxu0 %v502
        %536 = vmatprep.subr.bf16.mxu0 %v505
        %537 = vmatpush1.bf16.msra.mxu0 %v504
        %538 = vmatprep.subr.bf16.mxu0 %v507
        %539 = vmatpush1.bf16.msra.mxu0 %v506
        %540 = vmatprep.subr.bf16.mxu0 %v509
        %541 = vmatpush1.bf16.msra.mxu0 %v508
        %542 = vmatprep.subr.bf16.mxu0 %v511
        %543 = vmatpush1.bf16.msra.mxu0 %v510
        %544 = vmatprep.subr.bf16.mxu0 0
        %545 = vmatpush1.bf16.msra.mxu0 0
        %546 = vmatprep.subr.bf16.mxu0 0
        %547 = vmatpush1.bf16.msra.mxu0 0
        %548 = vmatprep.subr.bf16.mxu0 0
        %549 = vmatpush1.bf16.msra.mxu0 0
        %550 = vmatprep.subr.bf16.mxu0 0
        %551 = vmatpush1.bf16.msra.mxu0 0
        %552 = vmatprep.subr.bf16.mxu0 0
        %553 = vmatpush1.bf16.msra.mxu0 0
        %554 = vmatprep.subr.bf16.mxu0 0
        %555 = vmatpush1.bf16.msra.mxu0 0
        %556 = vmatprep.subr.bf16.mxu0 0
        %557 = vmatpush1.bf16.msra.mxu0 0
        %558 = vmatprep.subr.bf16.mxu0 0
        %559 = vmatpush1.bf16.msra.mxu0 0
        %560 = vmatprep.mubr.bf16.mxu0 0
        %561 = vmatmul.mubr.bf16.gmra.mrb[0].mxu0 %v416
        %v562 = vpop.f32.mrb[0].mxu0
        %v563 = vadd.f32 %v441, %v562
        %v564 = vpop.f32.mrb[0].mxu0
        %v565 = vadd.f32 %v445, %v564
        %v566 = vpop.f32.mrb[0].mxu0
        %v567 = vadd.f32 %v441, %v566
        %v568 = vpop.f32.mrb[0].mxu0
        %v569 = vadd.f32 %v445, %v568
        %570 = vmatprep.mubr.bf16.mxu0 0
        %571 = vmatmul.mubr.bf16.gmra.mrb[0].mxu0 %v417
        %v572 = vpop.f32.mrb[0].mxu0
        %v573 = vadd.f32 %v441, %v572
        %v574 = vpop.f32.mrb[0].mxu0
        %v575 = vadd.f32 %v445, %v574
        %v576 = vpop.f32.mrb[0].mxu0
        %v577 = vadd.f32 %v441, %v576
        %v578 = vpop.f32.mrb[0].mxu0
        %v579 = vadd.f32 %v445, %v578
        %580 = vmatprep.mubr.bf16.mxu0 0
        %581 = vmatmul.mubr.bf16.gmra.mrb[0].mxu0 %v418
        %v582 = vpop.f32.mrb[0].mxu0
        %v583 = vadd.f32 %v441, %v582
        %v584 = vpop.f32.mrb[0].mxu0
        %v585 = vadd.f32 %v445, %v584
        %v586 = vpop.f32.mrb[0].mxu0
        %v587 = vadd.f32 %v441, %v586
        %v588 = vpop.f32.mrb[0].mxu0
        %v589 = vadd.f32 %v445, %v588
        %590 = vmatprep.mubr.bf16.mxu0 0
        %591 = vmatmul.mubr.bf16.gmra.mrb[0].mxu0 %v419
        %v592 = vpop.f32.mrb[0].mxu0
        %v593 = vadd.f32 %v441, %v592
        %v594 = vpop.f32.mrb[0].mxu0
        %v595 = vadd.f32 %v445, %v594
        %v596 = vpop.f32.mrb[0].mxu0
        %v597 = vadd.f32 %v441, %v596
        %v598 = vpop.f32.mrb[0].mxu0
        %v599 = vadd.f32 %v445, %v598
        %600 = vdwg.mxu0
        %v601 = vmul.f32 %v563, %v563
        %v602 = vmul.f32 %v565, %v565
        %v603 = vmul.f32 %v567, %v567
        %v604 = vmul.f32 %v569, %v569
        %v605 = vmul.f32 %v573, %v573
        %v606 = vmul.f32 %v575, %v575
        %v607 = vmul.f32 %v577, %v577
        %v608 = vmul.f32 %v579, %v579
        %v609 = vmul.f32 %v583, %v583
        %v610 = vmul.f32 %v585, %v585
        %v611 = vmul.f32 %v587, %v587
        %v612 = vmul.f32 %v589, %v589
        %v613 = vmul.f32 %v593, %v593
        %v614 = vmul.f32 %v595, %v595
        %v615 = vmul.f32 %v597, %v597
        %v616 = vmul.f32 %v599, %v599
        %v617 = vmul.f32 %v563, %v601
        %v618 = vmul.f32 %v565, %v602
        %v619 = vmul.f32 %v567, %v603
        %v620 = vmul.f32 %v569, %v604
        %v621 = vmul.f32 %v573, %v605
        %v622 = vmul.f32 %v575, %v606
        %v623 = vmul.f32 %v577, %v607
        %v624 = vmul.f32 %v579, %v608
        %v625 = vmul.f32 %v583, %v609
        %v626 = vmul.f32 %v585, %v610
        %v627 = vmul.f32 %v587, %v611
        %v628 = vmul.f32 %v589, %v612
        %v629 = vmul.f32 %v593, %v613
        %v630 = vmul.f32 %v595, %v614
        %v631 = vmul.f32 %v597, %v615
        %v632 = vmul.f32 %v599, %v616
        %v633 = vmul.f32 %v617, 0.044715
        %v634 = vmul.f32 %v618, 0.044715
        %v635 = vmul.f32 %v619, 0.044715
        %v636 = vmul.f32 %v620, 0.044715
        %v637 = vmul.f32 %v621, 0.044715
        %v638 = vmul.f32 %v622, 0.044715
        %v639 = vmul.f32 %v623, 0.044715
        %v640 = vmul.f32 %v624, 0.044715
        %v641 = vmul.f32 %v625, 0.044715
        %v642 = vmul.f32 %v626, 0.044715
        %v643 = vmul.f32 %v627, 0.044715
        %v644 = vmul.f32 %v628, 0.044715
        %v645 = vmul.f32 %v629, 0.044715
        %v646 = vmul.f32 %v630, 0.044715
        %v647 = vmul.f32 %v631, 0.044715
        %v648 = vmul.f32 %v632, 0.044715
        %v649 = vadd.f32 %v563, %v633
        %v650 = vadd.f32 %v565, %v634
        %v651 = vadd.f32 %v567, %v635
        %v652 = vadd.f32 %v569, %v636
        %v653 = vadd.f32 %v573, %v637
        %v654 = vadd.f32 %v575, %v638
        %v655 = vadd.f32 %v577, %v639
        %v656 = vadd.f32 %v579, %v640
        %v657 = vadd.f32 %v583, %v641
        %v658 = vadd.f32 %v585, %v642
        %v659 = vadd.f32 %v587, %v643
        %v660 = vadd.f32 %v589, %v644
        %v661 = vadd.f32 %v593, %v645
        %v662 = vadd.f32 %v595, %v646
        %v663 = vadd.f32 %v597, %v647
        %v664 = vadd.f32 %v599, %v648
        %v665 = vmul.f32 %v649, 0.7978846
        %v666 = vmul.f32 %v650, 0.7978846
        %v667 = vmul.f32 %v651, 0.7978846
        %v668 = vmul.f32 %v652, 0.7978846
        %v669 = vmul.f32 %v653, 0.7978846
        %v670 = vmul.f32 %v654, 0.7978846
        %v671 = vmul.f32 %v655, 0.7978846
        %v672 = vmul.f32 %v656, 0.7978846
        %v673 = vmul.f32 %v657, 0.7978846
        %v674 = vmul.f32 %v658, 0.7978846
        %v675 = vmul.f32 %v659, 0.7978846
        %v676 = vmul.f32 %v660, 0.7978846
        %v677 = vmul.f32 %v661, 0.7978846
        %v678 = vmul.f32 %v662, 0.7978846
        %v679 = vmul.f32 %v663, 0.7978846
        %v680 = vmul.f32 %v664, 0.7978846
        %v681 = vtanh.pop %v665
        %v682 = vtanh.pop %v666
        %v683 = vtanh.pop %v667
        %v684 = vtanh.pop %v668
        %v685 = vtanh.pop %v669
        %v686 = vtanh.pop %v670
        %v687 = vtanh.pop %v671
        %v688 = vtanh.pop %v672
        %v689 = vtanh.pop %v673
        %v690 = vtanh.pop %v674
        %v691 = vtanh.pop %v675
        %v692 = vtanh.pop %v676
        %v693 = vtanh.pop %v677
        %v694 = vtanh.pop %v678
        %v695 = vtanh.pop %v679
        %v696 = vtanh.pop %v680
        %v697 = vadd.f32 %v681, 1.0
        %v698 = vadd.f32 %v682, 1.0
        %v699 = vadd.f32 %v683, 1.0
        %v700 = vadd.f32 %v684, 1.0
        %v701 = vadd.f32 %v685, 1.0
        %v702 = vadd.f32 %v686, 1.0
        %v703 = vadd.f32 %v687, 1.0
        %v704 = vadd.f32 %v688, 1.0
        %v705 = vadd.f32 %v689, 1.0
        %v706 = vadd.f32 %v690, 1.0
        %v707 = vadd.f32 %v691, 1.0
        %v708 = vadd.f32 %v692, 1.0
        %v709 = vadd.f32 %v693, 1.0
        %v710 = vadd.f32 %v694, 1.0
        %v711 = vadd.f32 %v695, 1.0
        %v712 = vadd.f32 %v696, 1.0
        %v713 = vmul.f32 %v697, 0.5
        %v714 = vmul.f32 %v698, 0.5
        %v715 = vmul.f32 %v699, 0.5
        %v716 = vmul.f32 %v700, 0.5
        %v717 = vmul.f32 %v701, 0.5
        %v718 = vmul.f32 %v702, 0.5
        %v719 = vmul.f32 %v703, 0.5
        %v720 = vmul.f32 %v704, 0.5
        %v721 = vmul.f32 %v705, 0.5
        %v722 = vmul.f32 %v706, 0.5
        %v723 = vmul.f32 %v707, 0.5
        %v724 = vmul.f32 %v708, 0.5
        %v725 = vmul.f32 %v709, 0.5
        %v726 = vmul.f32 %v710, 0.5
        %v727 = vmul.f32 %v711, 0.5
        %v728 = vmul.f32 %v712, 0.5
        %v729 = vmul.f32 %v563, %v713
        %v730 = vmul.f32 %v565, %v714
        %v731 = vmul.f32 %v567, %v715
        %v732 = vmul.f32 %v569, %v716
        %v733 = vmul.f32 %v573, %v717
        %v734 = vmul.f32 %v575, %v718
        %v735 = vmul.f32 %v577, %v719
        %v736 = vmul.f32 %v579, %v720
        %v737 = vmul.f32 %v583, %v721
        %v738 = vmul.f32 %v585, %v722
        %v739 = vmul.f32 %v587, %v723
        %v740 = vmul.f32 %v589, %v724
        %v741 = vmul.f32 %v593, %v725
        %v742 = vmul.f32 %v595, %v726
        %v743 = vmul.f32 %v597, %v727
        %v744 = vmul.f32 %v599, %v728
        %p745 = scmp.ne.s32.totalorder %s28, 2
        // Predicated region
        $region57: #{tpu_custom_call.1} parent=39 // pred_check
          %p746 = pneg %p745
        $region58: #{tpu_custom_call.1} parent=39 // pred_check_branch
          %748 = sbr.rel (%p746) target = $region60
        $region59: #{tpu_custom_call.1} parent=39 // pred_region
          %v749 = vld [vmem:[#allocation2] sm:$0xff]
          %v750 = vld [vmem:[#allocation2 + $0x8] sm:$0xff]
          %v751 = vrot.slane %v729, 4
          %v752 = vadd.f32 %v729, %v751
          %v753 = vrot.slane %v752, 2
          %v754 = vadd.f32 %v752, %v753
          %v755 = vrot.slane %v754, 1
          %v756 = vadd.f32 %v754, %v755
          %v757 = vrot.slane %v730, 4
          %v758 = vadd.f32 %v730, %v757
          %v759 = vrot.slane %v758, 2
          %v760 = vadd.f32 %v758, %v759
          %v761 = vrot.slane %v760, 1
          %v762 = vadd.f32 %v760, %v761
          %v763 = vrot.slane %v731, 4
          %v764 = vadd.f32 %v731, %v763
          %v765 = vrot.slane %v764, 2
          %v766 = vadd.f32 %v764, %v765
          %v767 = vrot.slane %v766, 1
          %v768 = vadd.f32 %v766, %v767
          %v769 = vrot.slane %v732, 4
          %v770 = vadd.f32 %v732, %v769
          %v771 = vrot.slane %v770, 2
          %v772 = vadd.f32 %v770, %v771
          %v773 = vrot.slane %v772, 1
          %v774 = vadd.f32 %v772, %v773
          %v775 = vrot.slane %v733, 4
          %v776 = vadd.f32 %v733, %v775
          %v777 = vrot.slane %v776, 2
          %v778 = vadd.f32 %v776, %v777
          %v779 = vrot.slane %v778, 1
          %v780 = vadd.f32 %v778, %v779
          %v781 = vrot.slane %v734, 4
          %v782 = vadd.f32 %v734, %v781
          %v783 = vrot.slane %v782, 2
          %v784 = vadd.f32 %v782, %v783
          %v785 = vrot.slane %v784, 1
          %v786 = vadd.f32 %v784, %v785
          %v787 = vrot.slane %v735, 4
          %v788 = vadd.f32 %v735, %v787
          %v789 = vrot.slane %v788, 2
          %v790 = vadd.f32 %v788, %v789
          %v791 = vrot.slane %v790, 1
          %v792 = vadd.f32 %v790, %v791
          %v793 = vrot.slane %v736, 4
          %v794 = vadd.f32 %v736, %v793
          %v795 = vrot.slane %v794, 2
          %v796 = vadd.f32 %v794, %v795
          %v797 = vrot.slane %v796, 1
          %v798 = vadd.f32 %v796, %v797
          %v799 = vrot.slane %v737, 4
          %v800 = vadd.f32 %v737, %v799
          %v801 = vrot.slane %v800, 2
          %v802 = vadd.f32 %v800, %v801
          %v803 = vrot.slane %v802, 1
          %v804 = vadd.f32 %v802, %v803
          %v805 = vrot.slane %v738, 4
          %v806 = vadd.f32 %v738, %v805
          %v807 = vrot.slane %v806, 2
          %v808 = vadd.f32 %v806, %v807
          %v809 = vrot.slane %v808, 1
          %v810 = vadd.f32 %v808, %v809
          %v811 = vrot.slane %v739, 4
          %v812 = vadd.f32 %v739, %v811
          %v813 = vrot.slane %v812, 2
          %v814 = vadd.f32 %v812, %v813
          %v815 = vrot.slane %v814, 1
          %v816 = vadd.f32 %v814, %v815
          %v817 = vrot.slane %v740, 4
          %v818 = vadd.f32 %v740, %v817
          %v819 = vrot.slane %v818, 2
          %v820 = vadd.f32 %v818, %v819
          %v821 = vrot.slane %v820, 1
          %v822 = vadd.f32 %v820, %v821
          %v823 = vrot.slane %v741, 4
          %v824 = vadd.f32 %v741, %v823
          %v825 = vrot.slane %v824, 2
          %v826 = vadd.f32 %v824, %v825
          %v827 = vrot.slane %v826, 1
          %v828 = vadd.f32 %v826, %v827
          %v829 = vrot.slane %v742, 4
          %v830 = vadd.f32 %v742, %v829
          %v831 = vrot.slane %v830, 2
          %v832 = vadd.f32 %v830, %v831
          %v833 = vrot.slane %v832, 1
          %v834 = vadd.f32 %v832, %v833
          %v835 = vrot.slane %v743, 4
          %v836 = vadd.f32 %v743, %v835
          %v837 = vrot.slane %v836, 2
          %v838 = vadd.f32 %v836, %v837
          %v839 = vrot.slane %v838, 1
          %v840 = vadd.f32 %v838, %v839
          %v841 = vrot.slane %v744, 4
          %v842 = vadd.f32 %v744, %v841
          %v843 = vrot.slane %v842, 2
          %v844 = vadd.f32 %v842, %v843
          %v845 = vrot.slane %v844, 1
          %v846 = vadd.f32 %v844, %v845
          %vm863 = vcmask 1041409
          %v864 = vsel %vm863, %v768, %v756
          %vm865 = vcmask 1042434
          %v866 = vsel %vm865, %v780, %v864
          %vm867 = vcmask 1043459
          %v868 = vsel %vm867, %v792, %v866
          %vm869 = vcmask 1044484
          %v870 = vsel %vm869, %v804, %v868
          %vm871 = vcmask 1045509
          %v872 = vsel %vm871, %v816, %v870
          %vm873 = vcmask 1046534
          %v874 = vsel %vm873, %v828, %v872
          %vm875 = vcmask 1047559
          %v876 = vsel %vm875, %v840, %v874
          %v877 = vsel %vm863, %v774, %v762
          %v878 = vsel %vm865, %v786, %v877
          %v879 = vsel %vm867, %v798, %v878
          %v880 = vsel %vm869, %v810, %v879
          %v881 = vsel %vm871, %v822, %v880
          %v882 = vsel %vm873, %v834, %v881
          %v883 = vsel %vm875, %v846, %v882
          %v886 = vadd.f32 %v749, %v876
          %v887 = vadd.f32 %v750, %v883
          %888 = vst [vmem:[#allocation2] sm:$0xff] %v886
          %889 = vst [vmem:[#allocation2 + $0x8] sm:$0xff] %v887
        $region60: #{tpu_custom_call.1} parent=39 // pred_fallthru
          _
        %p890 = scmp.eq.s32.totalorder %s28, 2
        // Predicated region
        $region61: #{tpu_custom_call.1} parent=39 // pred_check
          %p891 = pneg %p890
        $region62: #{tpu_custom_call.1} parent=39 // pred_check_branch
          %893 = sbr.rel (%p891) target = $region64
        $region63: #{tpu_custom_call.1} parent=39 // pred_region
          %s894 = smul.u32 %s28, 8
          %v895 = vlaneseq
          %v896 = vshrl.u32 %v895, 7
          %v897 = vstv %s894
          %v898 = vadd.s32 %v897, %v896
          %vm899 = vcmp.lt.s32.totalorder %v898, 20
          %v900 = vsel %vm899, 1, 0
          %vm901 = vcmp.eq.s32.totalorder %v900, 1
          %v902 = vsel %vm901, %v729, 0.0
          %v903 = vsel %vm901, %v730, 0.0
          %v904 = vsel %vm901, %v731, 0.0
          %v905 = vsel %vm901, %v732, 0.0
          %v906 = vsel %vm901, %v733, 0.0
          %v907 = vsel %vm901, %v734, 0.0
          %v908 = vsel %vm901, %v735, 0.0
          %v909 = vsel %vm901, %v736, 0.0
          %v910 = vsel %vm901, %v737, 0.0
          %v911 = vsel %vm901, %v738, 0.0
          %v912 = vsel %vm901, %v739, 0.0
          %v913 = vsel %vm901, %v740, 0.0
          %v914 = vsel %vm901, %v741, 0.0
          %v915 = vsel %vm901, %v742, 0.0
          %v916 = vsel %vm901, %v743, 0.0
          %v917 = vsel %vm901, %v744, 0.0
          %v918 = vld [vmem:[#allocation2] sm:$0xff]
          %v919 = vld [vmem:[#allocation2 + $0x8] sm:$0xff]
          %v920 = vrot.slane %v902, 4
          %v921 = vadd.f32 %v902, %v920
          %v922 = vrot.slane %v921, 2
          %v923 = vadd.f32 %v921, %v922
          %v924 = vrot.slane %v923, 1
          %v925 = vadd.f32 %v923, %v924
          %v926 = vrot.slane %v903, 4
          %v927 = vadd.f32 %v903, %v926
          %v928 = vrot.slane %v927, 2
          %v929 = vadd.f32 %v927, %v928
          %v930 = vrot.slane %v929, 1
          %v931 = vadd.f32 %v929, %v930
          %v932 = vrot.slane %v904, 4
          %v933 = vadd.f32 %v904, %v932
          %v934 = vrot.slane %v933, 2
          %v935 = vadd.f32 %v933, %v934
          %v936 = vrot.slane %v935, 1
          %v937 = vadd.f32 %v935, %v936
          %v938 = vrot.slane %v905, 4
          %v939 = vadd.f32 %v905, %v938
          %v940 = vrot.slane %v939, 2
          %v941 = vadd.f32 %v939, %v940
          %v942 = vrot.slane %v941, 1
          %v943 = vadd.f32 %v941, %v942
          %v944 = vrot.slane %v906, 4
          %v945 = vadd.f32 %v906, %v944
          %v946 = vrot.slane %v945, 2
          %v947 = vadd.f32 %v945, %v946
          %v948 = vrot.slane %v947, 1
          %v949 = vadd.f32 %v947, %v948
          %v950 = vrot.slane %v907, 4
          %v951 = vadd.f32 %v907, %v950
          %v952 = vrot.slane %v951, 2
          %v953 = vadd.f32 %v951, %v952
          %v954 = vrot.slane %v953, 1
          %v955 = vadd.f32 %v953, %v954
          %v956 = vrot.slane %v908, 4
          %v957 = vadd.f32 %v908, %v956
          %v958 = vrot.slane %v957, 2
          %v959 = vadd.f32 %v957, %v958
          %v960 = vrot.slane %v959, 1
          %v961 = vadd.f32 %v959, %v960
          %v962 = vrot.slane %v909, 4
          %v963 = vadd.f32 %v909, %v962
          %v964 = vrot.slane %v963, 2
          %v965 = vadd.f32 %v963, %v964
          %v966 = vrot.slane %v965, 1
          %v967 = vadd.f32 %v965, %v966
          %v968 = vrot.slane %v910, 4
          %v969 = vadd.f32 %v910, %v968
          %v970 = vrot.slane %v969, 2
          %v971 = vadd.f32 %v969, %v970
          %v972 = vrot.slane %v971, 1
          %v973 = vadd.f32 %v971, %v972
          %v974 = vrot.slane %v911, 4
          %v975 = vadd.f32 %v911, %v974
          %v976 = vrot.slane %v975, 2
          %v977 = vadd.f32 %v975, %v976
          %v978 = vrot.slane %v977, 1
          %v979 = vadd.f32 %v977, %v978
          %v980 = vrot.slane %v912, 4
          %v981 = vadd.f32 %v912, %v980
          %v982 = vrot.slane %v981, 2
          %v983 = vadd.f32 %v981, %v982
          %v984 = vrot.slane %v983, 1
          %v985 = vadd.f32 %v983, %v984
          %v986 = vrot.slane %v913, 4
          %v987 = vadd.f32 %v913, %v986
          %v988 = vrot.slane %v987, 2
          %v989 = vadd.f32 %v987, %v988
          %v990 = vrot.slane %v989, 1
          %v991 = vadd.f32 %v989, %v990
          %v992 = vrot.slane %v914, 4
          %v993 = vadd.f32 %v914, %v992
          %v994 = vrot.slane %v993, 2
          %v995 = vadd.f32 %v993, %v994
          %v996 = vrot.slane %v995, 1
          %v997 = vadd.f32 %v995, %v996
          %v998 = vrot.slane %v915, 4
          %v999 = vadd.f32 %v915, %v998
          %v1000 = vrot.slane %v999, 2
          %v1001 = vadd.f32 %v999, %v1000
          %v1002 = vrot.slane %v1001, 1
          %v1003 = vadd.f32 %v1001, %v1002
          %v1004 = vrot.slane %v916, 4
          %v1005 = vadd.f32 %v916, %v1004
          %v1006 = vrot.slane %v1005, 2
          %v1007 = vadd.f32 %v1005, %v1006
          %v1008 = vrot.slane %v1007, 1
          %v1009 = vadd.f32 %v1007, %v1008
          %v1010 = vrot.slane %v917, 4
          %v1011 = vadd.f32 %v917, %v1010
          %v1012 = vrot.slane %v1011, 2
          %v1013 = vadd.f32 %v1011, %v1012
          %v1014 = vrot.slane %v1013, 1
          %v1015 = vadd.f32 %v1013, %v1014
          %vm1032 = vcmask 1041409
          %v1033 = vsel %vm1032, %v937, %v925
          %vm1034 = vcmask 1042434
          %v1035 = vsel %vm1034, %v949, %v1033
          %vm1036 = vcmask 1043459
          %v1037 = vsel %vm1036, %v961, %v1035
          %vm1038 = vcmask 1044484
          %v1039 = vsel %vm1038, %v973, %v1037
          %vm1040 = vcmask 1045509
          %v1041 = vsel %vm1040, %v985, %v1039
          %vm1042 = vcmask 1046534
          %v1043 = vsel %vm1042, %v997, %v1041
          %vm1044 = vcmask 1047559
          %v1045 = vsel %vm1044, %v1009, %v1043
          %v1046 = vsel %vm1032, %v943, %v931
          %v1047 = vsel %vm1034, %v955, %v1046
          %v1048 = vsel %vm1036, %v967, %v1047
          %v1049 = vsel %vm1038, %v979, %v1048
          %v1050 = vsel %vm1040, %v991, %v1049
          %v1051 = vsel %vm1042, %v1003, %v1050
          %v1052 = vsel %vm1044, %v1015, %v1051
          %v1055 = vadd.f32 %v918, %v1045
          %v1056 = vadd.f32 %v919, %v1052
          %1057 = vst [vmem:[#allocation2] sm:$0xff] %v1055
          %1058 = vst [vmem:[#allocation2 + $0x8] sm:$0xff] %v1056
          %v1059 = vld [vmem:[#allocation2] sm:$0xff]
          %v1060 = vld [vmem:[#allocation2 + $0x8] sm:$0xff]
          %v1061 = vmul.f32 %v1059, 0.05
          %v1062 = vmul.f32 %v1060, 0.05
          %v1063 = vpack.c.bf16 %v1061, %v1061
          %v1064 = vpack.c.bf16 %v1062, %v1062
          %v1065 = vld [vmem:[#allocation8] sm:$0xff]
          %v1066 = vld [vmem:[#allocation8 + $0x8] sm:$0xff]
          %v1067 = vld [vmem:[#allocation8 + $0x10] sm:$0xff]
          %v1068 = vld [vmem:[#allocation8 + $0x18] sm:$0xff]
          %v1069 = vld [vmem:[#allocation8 + $0x20] sm:$0xff]
          %v1070 = vld [vmem:[#allocation8 + $0x28] sm:$0xff]
          %v1071 = vld [vmem:[#allocation8 + $0x30] sm:$0xff]
          %v1072 = vld [vmem:[#allocation8 + $0x38] sm:$0xff]
          %v1073 = vld [vmem:[#allocation8 + $0x40] sm:$0xff]
          %v1074 = vld [vmem:[#allocation8 + $0x48] sm:$0xff]
          %v1075 = vld [vmem:[#allocation8 + $0x50] sm:$0xff]
          %v1076 = vld [vmem:[#allocation8 + $0x58] sm:$0xff]
          %v1077 = vld [vmem:[#allocation8 + $0x60] sm:$0xff]
          %v1078 = vld [vmem:[#allocation8 + $0x68] sm:$0xff]
          %v1079 = vld [vmem:[#allocation8 + $0x70] sm:$0xff]
          %v1080 = vld [vmem:[#allocation8 + $0x78] sm:$0xff]
          %v1081 = vld [vmem:[#allocation8 + $0x80] sm:$0xff]
          %v1082 = vld [vmem:[#allocation8 + $0x88] sm:$0xff]
          %v1083 = vld [vmem:[#allocation8 + $0x90] sm:$0xff]
          %v1084 = vld [vmem:[#allocation8 + $0x98] sm:$0xff]
          %v1085 = vld [vmem:[#allocation8 + $0xa0] sm:$0xff]
          %v1086 = vld [vmem:[#allocation8 + $0xa8] sm:$0xff]
          %v1087 = vld [vmem:[#allocation8 + $0xb0] sm:$0xff]
          %v1088 = vld [vmem:[#allocation8 + $0xb8] sm:$0xff]
          %v1089 = vld [vmem:[#allocation8 + $0xc0] sm:$0xff]
          %v1090 = vld [vmem:[#allocation8 + $0xc8] sm:$0xff]
          %v1091 = vld [vmem:[#allocation8 + $0xd0] sm:$0xff]
          %v1092 = vld [vmem:[#allocation8 + $0xd8] sm:$0xff]
          %v1093 = vld [vmem:[#allocation8 + $0xe0] sm:$0xff]
          %v1094 = vld [vmem:[#allocation8 + $0xe8] sm:$0xff]
          %v1095 = vld [vmem:[#allocation8 + $0xf0] sm:$0xff]
          %v1096 = vld [vmem:[#allocation8 + $0xf8] sm:$0xff]
          %v1097 = vld [vmem:[%s4] sm:$0x3]
          %v1099 = vlaneseq
          %v1100 = vshrl.u32 %v1099, 7
          %v1101 = vsub.s32 0, %v1100
          %v1102 = vrot.slane %v1097, %v1101
          %v1103 = vlaneseq
          %v1104 = vshrl.u32 %v1103, 7
          %v1105 = vsub.s32 1, %v1104
          %v1106 = vrot.slane %v1097, %v1105
          %v1141 = vunpack.c.l.b16 %v1065
          %v1142 = vunpack.c.h.b16 %v1065
          %v1143 = vunpack.c.l.b16 %v1066
          %v1144 = vunpack.c.h.b16 %v1066
          %v1145 = vunpack.c.l.b16 %v1067
          %v1146 = vunpack.c.h.b16 %v1067
          %v1147 = vunpack.c.l.b16 %v1068
          %v1148 = vunpack.c.h.b16 %v1068
          %v1149 = vunpack.c.l.b16 %v1069
          %v1150 = vunpack.c.h.b16 %v1069
          %v1151 = vunpack.c.l.b16 %v1070
          %v1152 = vunpack.c.h.b16 %v1070
          %v1153 = vunpack.c.l.b16 %v1071
          %v1154 = vunpack.c.h.b16 %v1071
          %v1155 = vunpack.c.l.b16 %v1072
          %v1156 = vunpack.c.h.b16 %v1072
          %v1157 = vunpack.c.l.b16 %v1073
          %v1158 = vunpack.c.h.b16 %v1073
          %v1159 = vunpack.c.l.b16 %v1074
          %v1160 = vunpack.c.h.b16 %v1074
          %v1161 = vunpack.c.l.b16 %v1075
          %v1162 = vunpack.c.h.b16 %v1075
          %v1163 = vunpack.c.l.b16 %v1076
          %v1164 = vunpack.c.h.b16 %v1076
          %v1165 = vunpack.c.l.b16 %v1077
          %v1166 = vunpack.c.h.b16 %v1077
          %v1167 = vunpack.c.l.b16 %v1078
          %v1168 = vunpack.c.h.b16 %v1078
          %v1169 = vunpack.c.l.b16 %v1079
          %v1170 = vunpack.c.h.b16 %v1079
          %v1171 = vunpack.c.l.b16 %v1080
          %v1172 = vunpack.c.h.b16 %v1080
          %v1173 = vunpack.c.l.b16 %v1081
          %v1174 = vunpack.c.h.b16 %v1081
          %v1175 = vunpack.c.l.b16 %v1082
          %v1176 = vunpack.c.h.b16 %v1082
          %v1177 = vunpack.c.l.b16 %v1083
          %v1178 = vunpack.c.h.b16 %v1083
          %v1179 = vunpack.c.l.b16 %v1084
          %v1180 = vunpack.c.h.b16 %v1084
          %v1181 = vunpack.c.l.b16 %v1085
          %v1182 = vunpack.c.h.b16 %v1085
          %v1183 = vunpack.c.l.b16 %v1086
          %v1184 = vunpack.c.h.b16 %v1086
          %v1185 = vunpack.c.l.b16 %v1087
          %v1186 = vunpack.c.h.b16 %v1087
          %v1187 = vunpack.c.l.b16 %v1088
          %v1188 = vunpack.c.h.b16 %v1088
          %v1189 = vunpack.c.l.b16 %v1089
          %v1190 = vunpack.c.h.b16 %v1089
          %v1191 = vunpack.c.l.b16 %v1090
          %v1192 = vunpack.c.h.b16 %v1090
          %v1193 = vunpack.c.l.b16 %v1091
          %v1194 = vunpack.c.h.b16 %v1091
          %v1195 = vunpack.c.l.b16 %v1092
          %v1196 = vunpack.c.h.b16 %v1092
          %v1197 = vunpack.c.l.b16 %v1093
          %v1198 = vunpack.c.h.b16 %v1093
          %v1199 = vunpack.c.l.b16 %v1094
          %v1200 = vunpack.c.h.b16 %v1094
          %v1201 = vunpack.c.l.b16 %v1095
          %v1202 = vunpack.c.h.b16 %v1095
          %v1203 = vunpack.c.l.b16 %v1096
          %v1204 = vunpack.c.h.b16 %v1096
          %v1205 = vpack.c.b16 %v1143, %v1141
          %v1206 = vpack.c.b16 %v1144, %v1142
          %v1207 = vpack.c.b16 %v1147, %v1145
          %v1208 = vpack.c.b16 %v1148, %v1146
          %v1209 = vpack.c.b16 %v1151, %v1149
          %v1210 = vpack.c.b16 %v1152, %v1150
          %v1211 = vpack.c.b16 %v1155, %v1153
          %v1212 = vpack.c.b16 %v1156, %v1154
          %v1213 = vpack.c.b16 %v1159, %v1157
          %v1214 = vpack.c.b16 %v1160, %v1158
          %v1215 = vpack.c.b16 %v1163, %v1161
          %v1216 = vpack.c.b16 %v1164, %v1162
          %v1217 = vpack.c.b16 %v1167, %v1165
          %v1218 = vpack.c.b16 %v1168, %v1166
          %v1219 = vpack.c.b16 %v1171, %v1169
          %v1220 = vpack.c.b16 %v1172, %v1170
          %v1221 = vpack.c.b16 %v1175, %v1173
          %v1222 = vpack.c.b16 %v1176, %v1174
          %v1223 = vpack.c.b16 %v1179, %v1177
          %v1224 = vpack.c.b16 %v1180, %v1178
          %v1225 = vpack.c.b16 %v1183, %v1181
          %v1226 = vpack.c.b16 %v1184, %v1182
          %v1227 = vpack.c.b16 %v1187, %v1185
          %v1228 = vpack.c.b16 %v1188, %v1186
          %v1229 = vpack.c.b16 %v1191, %v1189
          %v1230 = vpack.c.b16 %v1192, %v1190
          %v1231 = vpack.c.b16 %v1195, %v1193
          %v1232 = vpack.c.b16 %v1196, %v1194
          %v1233 = vpack.c.b16 %v1199, %v1197
          %v1234 = vpack.c.b16 %v1200, %v1198
          %v1235 = vpack.c.b16 %v1203, %v1201
          %v1236 = vpack.c.b16 %v1204, %v1202
          %1269 = vmatprep.subr.bf16.mxu0 %v1206
          %1270 = vmatpush1.bf16.msra.mxu0 %v1205
          %1271 = vmatprep.subr.bf16.mxu0 %v1208
          %1272 = vmatpush1.bf16.msra.mxu0 %v1207
          %1273 = vmatprep.subr.bf16.mxu0 %v1210
          %1274 = vmatpush1.bf16.msra.mxu0 %v1209
          %1275 = vmatprep.subr.bf16.mxu0 %v1212
          %1276 = vmatpush1.bf16.msra.mxu0 %v1211
          %1277 = vmatprep.subr.bf16.mxu0 %v1214
          %1278 = vmatpush1.bf16.msra.mxu0 %v1213
          %1279 = vmatprep.subr.bf16.mxu0 %v1216
          %1280 = vmatpush1.bf16.msra.mxu0 %v1215
          %1281 = vmatprep.subr.bf16.mxu0 %v1218
          %1282 = vmatpush1.bf16.msra.mxu0 %v1217
          %1283 = vmatprep.subr.bf16.mxu0 %v1220
          %1284 = vmatpush1.bf16.msra.mxu0 %v1219
          %1285 = vmatprep.subr.bf16.mxu0 %v1222
          %1286 = vmatpush1.bf16.msra.mxu0 %v1221
          %1287 = vmatprep.subr.bf16.mxu0 %v1224
          %1288 = vmatpush1.bf16.msra.mxu0 %v1223
          %1289 = vmatprep.subr.bf16.mxu0 %v1226
          %1290 = vmatpush1.bf16.msra.mxu0 %v1225
          %1291 = vmatprep.subr.bf16.mxu0 %v1228
          %1292 = vmatpush1.bf16.msra.mxu0 %v1227
          %1293 = vmatprep.subr.bf16.mxu0 %v1230
          %1294 = vmatpush1.bf16.msra.mxu0 %v1229
          %1295 = vmatprep.subr.bf16.mxu0 %v1232
          %1296 = vmatpush1.bf16.msra.mxu0 %v1231
          %1297 = vmatprep.subr.bf16.mxu0 %v1234
          %1298 = vmatpush1.bf16.msra.mxu0 %v1233
          %1299 = vmatprep.subr.bf16.mxu0 %v1236
          %1300 = vmatpush1.bf16.msra.mxu0 %v1235
          %1301 = vmatprep.mubr.bf16.mxu0 %v1064
          %1302 = vmatmul.mubr.bf16.gmra.mrb[0].mxu0 %v1063
          %v1303 = vpop.f32.mrb[0].mxu0
          %v1304 = vadd.f32 %v1102, %v1303
          %v1305 = vpop.f32.mrb[0].mxu0
          %v1306 = vadd.f32 %v1106, %v1305
          %v1307 = vpop.f32.mrb[0].mxu0
          %v1308 = vpop.f32.mrb[0].mxu0
          %1309 = vdwg.mxu0
          %1310 = vst [vmem:[%s287] sm:$0xff] %v1304
          %1311 = vst [vmem:[%s287 + $0x8] sm:$0xff] %v1306
        $region64: #{tpu_custom_call.1} parent=39 // pred_fallthru
          _
        %s1312 = sand.u32 %s155, 1
        %s1313 = scalar_lea.sflag [#allocation5], %s1312
        %s1314 = sand.u32 %s155, 1
        %s1315 = smul.addr %s1314, 16
        %s1316 = scalar_lea.vmem [#allocation9], %s1315
        // Predicated region
        $region65: #{tpu_custom_call.1} parent=39 // pred_check
          %p1317 = pneg %p165
        $region66: #{tpu_custom_call.1} parent=39 // pred_check_branch
          %1319 = sbr.rel (%p1317) target = $region68
        $region67: #{tpu_custom_call.1} parent=39 // pred_region
          %s1321 = ssub.s32 256, 256
          %1322 = vsyncadd %s1313, %s1321
          %s1323 = smul.addr %s27, 2
          %s1324 = smul.addr %s1323, 128
          %s1325 = scalar_lea.hbm %s5, %s1324
          %s1327 = sshll.u32 %s1316, 4
          %s1328 = int_to_ptr.vmem [resolvable:$true] %s1327
          %1330 = dma.vmem_to_hbm [thread:$0]  %s1328, 256, %s1325, %s1313
        $region68: #{tpu_custom_call.1} parent=39 // pred_fallthru
          _
      $region40: #{tpu_custom_call.1} parent=5 // pred_fallthru
        _
      %p1331 = scmp.le.s32.totalorder 2, %s18
      // Predicated region
      $region69: #{tpu_custom_call.1} parent=5 // pred_check
        %p1332 = pneg %p1331
      $region70: #{tpu_custom_call.1} parent=5 // pred_check_branch
        %1334 = sbr.rel (%p1332) target = $region72
      $region71: #{tpu_custom_call.1} parent=5 // pred_region
        %s1335 = ssub.s32 %s18, 2
        // Predicated region
        $region73: #{tpu_custom_call.1} parent=71 // pred_check
          %p1336 = pneg %p171
        $region74: #{tpu_custom_call.1} parent=71 // pred_check_branch
          %1338 = sbr.rel (%p1336) target = $region76
        $region75: #{tpu_custom_call.1} parent=71 // pred_region
          %s1339 = sand.u32 %s156, 1
          %s1340 = scalar_lea.sflag [#allocation5], %s1339
          %s1341 = sand.u32 %s156, 1
          %s1342 = smul.addr %s1341, 16
          %s1343 = scalar_lea.vmem [#allocation9], %s1342
          %1344 = dma.done %s1340, 256
        $region76: #{tpu_custom_call.1} parent=71 // pred_fallthru
          _
      $region72: #{tpu_custom_call.1} parent=5 // pred_fallthru
        _
    $region6: #{tpu_custom_call.1} parent=1 // loop_footer
      %s22 = sadd.s32 1, %s18
    $region7: #{tpu_custom_call.1} parent=1 // loop_footer_branch
      %17 = sbr.rel target = $region3
    $region8: #{tpu_custom_call.1} parent=1 // loop_exit
      _
    %1345 = vsyncpa [#allocation4], 1
    %s1346 = scalar_lea.sflag [#allocation4], 1
    %1347 = vsyncpa %s1346, 1
    %1348 = vsyncpa [#allocation7], 1
    %1349 = vsyncpa [#allocation5], 1
    %s1350 = scalar_lea.sflag [#allocation5], 1
    %1351 = vsyncpa %s1350, 1

</llo_original>
